<compile_context>
chip_gen: v7x
topology: tpu7x:2x2x1
jax: 0.10.0
libtpu: 0.0.40
codegen_flags: <defaults>
</compile_context>

<pallas_src>
import functools

import jax
import jax.numpy as jnp
from jax.experimental import pallas as pl
from jax.experimental.pallas import tpu as pltpu

LANE = 128  # all padded lane widths


def _round_up(x, m):
    return (x + m - 1) // m * m


def mlp_classifier_kernel(x_ref, w_ref, b_ref, out_ref, *, tsp, use_final_activation):
    """One batch tile.

    x_ref:   (TB, TSp)  bf16 input tile, natural (time, series) layout merged onto lanes
    w_ref:   (5, 128, 128) bf16 packed weights (block-diag conv1, block-diag conv2,
                           Toeplitz temporal conv, Linear1.T, Linear2.T), zero padded
    b_ref:   (8, 128) f32 packed bias rows (rows 0..4 used)
    out_ref: (TB, 128) bf16 output tile, valid lanes [:C]
    """
    x = x_ref[...]                                                       # (TB, TSp) bf16

    # series 1x1 conv #1 (block-diagonal matmul; valid lanes [:T*h0]); f32 accumulate
    z = jnp.dot(x, w_ref[0, :tsp, :], preferred_element_type=jnp.float32) + b_ref[0:1, :]
    z = jnp.maximum(z, 0.0).astype(jnp.bfloat16)
    # series 1x1 conv #2 -> single channel per timestep (valid lanes [:T]), then ReLU
    z = jnp.dot(z, w_ref[1], preferred_element_type=jnp.float32) + b_ref[1:2, :]
    z = jnp.maximum(z, 0.0).astype(jnp.bfloat16)
    # temporal conv + flatten as one banded/Toeplitz matmul (PyTorch flatten order h*L+t)
    y = jnp.dot(z, w_ref[2], preferred_element_type=jnp.float32) + b_ref[2:3, :]
    # final_linear_layers: ReLU, Linear(h1*L, h2), ReLU, Linear(h2, C)
    h = jnp.maximum(y, 0.0).astype(jnp.bfloat16)
    h = jnp.dot(h, w_ref[3], preferred_element_type=jnp.float32) + b_ref[3:4, :]
    h = jnp.maximum(h, 0.0).astype(jnp.bfloat16)
    o = jnp.dot(h, w_ref[4], preferred_element_type=jnp.float32) + b_ref[4:5, :]
    if use_final_activation:
        o = jnp.maximum(o, 0.0)                                          # final ReLU
    out_ref[...] = o.astype(out_ref.dtype)                               # lane-dense bf16 store


def make_params(key, num_series, num_in_timesteps, num_out_classes, hidden_sizes,
                post_convs_size=6):
    """Deterministic synthetic parameters (PyTorch default-uniform style)."""
    T = num_in_timesteps
    K = T - post_convs_size + (1 - (T - post_convs_size) % 2)
    L_out = T - K + 1
    assert L_out == post_convs_size, "choose T so that T - POST_CONVS_SIZE is even"
    assert len(hidden_sizes) == 3  # this script instantiates the 3-hidden-size variant
    h0, h1, h2 = hidden_sizes
    C = num_out_classes
    keys = jax.random.split(key, 10)

    def init(k, shape, fan_in):
        bound = 1.0 / (fan_in ** 0.5)
        return jax.random.uniform(k, shape, jnp.float32, -bound, bound)

    params = dict(
        w1=init(keys[0], (h0, num_series), num_series),    # Conv1d(S, h0, 1).weight[..., 0]
        b1=init(keys[1], (h0,), num_series),
        w2=init(keys[2], (1, h0), h0),                     # Conv1d(h0, 1, 1).weight[..., 0]
        b2=init(keys[3], (1,), h0),
        wt=init(keys[4], (h1, K), K),                      # Conv1d(1, h1, K).weight[:, 0, :]
        bt=init(keys[5], (h1,), K),
        wl1=init(keys[6], (h2, h1 * L_out), h1 * L_out),   # Linear(h1*6, h2)
        bl1=init(keys[7], (h2,), h1 * L_out),
        wl2=init(keys[8], (C, h2), h2),                    # Linear(h2, C)
        bl2=init(keys[9], (C,), h2),
    )
    return params, K, L_out


def pack_params(params, num_series, num_in_timesteps, num_out_classes, K, L_out):
    """Host-side packing of all weights/biases into two padded VMEM slabs.

    Weights are packed (and the module's X.transpose(2,1) folded in) in f32, then cast
    to bf16 once; biases stay f32 for the VPU-side adds.
    """
    S, T, C = num_series, num_in_timesteps, num_out_classes
    h0 = params['w1'].shape[0]
    h1 = params['wt'].shape[0]
    h2 = params['wl1'].shape[0]
    TS = T * S
    P = LANE
    assert TS <= P and T * h0 <= P and T <= P and h1 * L_out <= P and h2 <= P and C <= P

    eye_t = jnp.eye(T, dtype=jnp.float32)
    # Layer A (Conv1d(S,h0,1)): W1[t*S+s, t*h0+h] = w1[h, s]
    W1 = jnp.einsum('tu,hs->tsuh', eye_t, params['w1']).reshape(TS, T * h0)
    # Layer B (Conv1d(h0,1,1)): W2[t*h0+h, t] = w2[0, h]
    W2 = jnp.einsum('tu,h->thu', eye_t, params['w2'][0]).reshape(T * h0, T)
    # Layer C (Conv1d(1,h1,K) + flatten): Toeplitz Wt[t0+k, h*L_out+t0] = wt[h, k]
    t_idx = jnp.arange(T)[:, None]                       # (T, 1)
    t0_idx = jnp.arange(L_out)[None, :]                  # (1, L)
    k_idx = t_idx - t0_idx                               # (T, L)
    valid = (k_idx >= 0) & (k_idx < K)
    Wt = jnp.where(valid[None, :, :],
                   params['wt'][:, jnp.clip(k_idx, 0, K - 1)], 0.0)   # (h1, T, L)
    Wt = jnp.transpose(Wt, (1, 0, 2)).reshape(T, h1 * L_out)          # cols in h*L+t order
    Wl1 = params['wl1'].T                                # (h1*L_out, h2)
    Wl2 = params['wl2'].T                                # (h2, C)

    def pad_pp(w):
        return jnp.pad(w, ((0, P - w.shape[0]), (0, P - w.shape[1])))

    w_slab = jnp.stack([pad_pp(W1), pad_pp(W2), pad_pp(Wt), pad_pp(Wl1), pad_pp(Wl2)])
    w_slab = w_slab.astype(jnp.bfloat16)                 # single-pass MXU operands

    def pad_row(v):
        return jnp.pad(v.astype(jnp.float32), (0, P - v.shape[0]))

    b_rows = jnp.stack([
        pad_row(jnp.tile(params['b1'], T)),                       # b1[t*h0+h] = b1[h]
        pad_row(jnp.full((T,), params['b2'][0], jnp.float32)),    # b2 broadcast over t
        pad_row(jnp.repeat(params['bt'], L_out)),                 # bt[h*L_out+t] = bt[h]
        pad_row(params['bl1']),
        pad_row(params['bl2']),
    ])
    b_slab = jnp.concatenate([b_rows, jnp.zeros((3, P), jnp.float32)], axis=0)  # (8, P)
    return w_slab, b_slab


def _choose_batch_tile(B, block_batch, min_steps=4):
    """Batch tile: big enough to amortize ~0.35us/step, small enough that the grid
    keeps >= min_steps steps (>=2 per v7x TensorCore) when B allows it."""
    TB = min(block_batch, _round_up(B, 8))
    if B >= min_steps * 8:
        TB = min(TB, max(8, _round_up((B + min_steps - 1) // min_steps, 8)))
    TB = max(TB, 8)
    assert TB % 8 == 0
    return TB


def mlp_classifier_forward(x, params, num_out_classes, K, L_out,
                           use_final_activation=True, block_batch=1024):
    """x: (B, T, S) float32.  Returns (out (B, C) float32, None) like the PyTorch module."""
    B, T, S = x.shape
    C = num_out_classes
    P = LANE
    TS = T * S
    TSp = _round_up(TS, 8)                # sublane-aligned lane width for the input tile

    w_slab, b_slab = pack_params(params, S, T, C, K, L_out)

    # Natural layout: no transpose; merge (T, S) onto the lane axis (free reshape), bf16.
    x2 = x.reshape(B, TS).astype(jnp.bfloat16)
    if TSp != TS:
        x2 = jnp.pad(x2, ((0, 0), (0, TSp - TS)))

    TB = _choose_batch_tile(B, block_batch)
    Bp = _round_up(B, TB)
    if Bp != B:
        x2 = jnp.pad(x2, ((0, Bp - B), (0, 0)))

    flops = int(Bp * (2 * TSp * P + 4 * 2 * P * P))
    bytes_accessed = int(Bp * TSp * 2 + 5 * P * P * 2 + 8 * P * 4 + Bp * P * 2)

    kernel = functools.partial(mlp_classifier_kernel, tsp=TSp,
                               use_final_activation=use_final_activation)

    out_padded = pl.pallas_call(
        kernel,
        out_shape=jax.ShapeDtypeStruct((Bp, P), jnp.bfloat16),
        grid=(Bp // TB,),
        in_specs=[
            pl.BlockSpec((TB, TSp), lambda i: (i, 0)),     # batch tile (bf16)
            pl.BlockSpec((5, P, P), lambda i: (0, 0, 0)),  # weight slab (bf16, resident)
            pl.BlockSpec((8, P), lambda i: (0, 0)),        # bias slab (f32, resident)
        ],
        out_specs=pl.BlockSpec((TB, P), lambda i: (i, 0)),
        compiler_params=pltpu.CompilerParams(dimension_semantics=("parallel",)),
        cost_estimate=pl.CostEstimate(flops=flops, transcendentals=0,
                                      bytes_accessed=bytes_accessed),
    )(x2, w_slab, b_slab)

    # Slice to valid samples/classes; return f32 like the PyTorch module.
    return out_padded[:B, :C].astype(jnp.float32), None


def reference_forward(x, params, K, L_out, use_final_activation=True):
    """Pure-JAX f32 reference matching the PyTorch forward exactly."""
    B = x.shape[0]
    xt = jnp.transpose(x, (0, 2, 1))                                    # (B, S, T)
    z1 = jnp.einsum('hs,bst->bht', params['w1'], xt) + params['b1'][None, :, None]
    z1 = jnp.maximum(z1, 0.0)
    z2 = jnp.einsum('oh,bht->bot', params['w2'], z1) + params['b2'][None, :, None]
    z2 = jnp.maximum(z2, 0.0)[:, 0, :]                                  # (B, T)
    ys = [jnp.einsum('hk,bk->bh', params['wt'], z2[:, t:t + K]) + params['bt'][None, :]
          for t in range(L_out)]
    y = jnp.stack(ys, axis=2)                                           # (B, h1, L_out)
    flat = y.reshape(B, -1)                                             # PyTorch flatten order
    h = jnp.maximum(flat, 0.0) @ params['wl1'].T + params['bl1']
    o = jnp.maximum(h, 0.0) @ params['wl2'].T + params['bl2']
    if use_final_activation:
        o = jnp.maximum(o, 0.0)
    return o


if __name__ == "__main__":
    B, S, T, C = 256, 4, 16, 5
    hidden_sizes = [8, 16, 32]          # [h0, h1, h2]

    key = jax.random.PRNGKey(0)
    kp, kx = jax.random.split(key)
    params, K, L_out = make_params(kp, S, T, C, hidden_sizes)
    x = jax.random.normal(kx, (B, T, S), jnp.float32)   # module input: (batch, time, series)

    out, _ = mlp_classifier_forward(x, params, C, K, L_out, use_final_activation=True)
    out = jax.block_until_ready(out)

    ref = reference_forward(x, params, K, L_out, use_final_activation=True)
    assert out.shape == (B, C)
    # bf16 MXU operands + bf16 output store vs. f32 reference -> loosened tolerance.
    assert jnp.allclose(out, ref, atol=5e-2, rtol=5e-2), (out, ref)
    print("KERNEL_OK")
</pallas_src>

<mosaic_0001>
module attributes {stable_mosaic.version = 11 : i64} {
  func.func @mlp_classifier_kernel(%arg0: i32, %arg1: memref<64x64xbf16, #tpu.memory_space<vmem>>, %arg2: memref<5x128x128xbf16, #tpu.memory_space<vmem>>, %arg3: memref<8x128xf32, #tpu.memory_space<vmem>>, %arg4: memref<64x128xbf16, #tpu.memory_space<vmem>>) attributes {dimension_semantics = [#tpu.dimension_semantics<parallel>], iteration_bounds = array<i64: 4>, scalar_prefetch = 0 : i64, scratch_operands = 0 : i64, tpu.core_type = #tpu.core_type<tc>, window_params = [{transform_indices = @transform_0, window_bounds = array<i64: 64, 64>}, {pipeline_mode = #tpu.pipeline_mode<synchronous>, transform_indices = @transform_1, window_bounds = array<i64: 5, 128, 128>}, {pipeline_mode = #tpu.pipeline_mode<synchronous>, transform_indices = @transform_2, window_bounds = array<i64: 8, 128>}, {transform_indices = @transform_3, window_bounds = array<i64: 64, 128>}]} {
    %c0 = arith.constant 0 : index
    %c0_0 = arith.constant 0 : index
    %0 = vector.load %arg1[%c0, %c0_0] : memref<64x64xbf16, #tpu.memory_space<vmem>>, vector<64x64xbf16>
    %c0_1 = arith.constant 0 : index
    %c0_2 = arith.constant 0 : index
    %c0_3 = arith.constant 0 : index
    %1 = vector.load %arg2[%c0_1, %c0_2, %c0_3] : memref<5x128x128xbf16, #tpu.memory_space<vmem>>, vector<1x64x128xbf16>
    %2 = vector.shape_cast %1 : vector<1x64x128xbf16> to vector<64x128xbf16>
    %cst = arith.constant dense<0.000000e+00> : vector<64x128xf32>
    %3 = tpu.matmul %0, %2, %cst {dimension_numbers = #tpu.dot_dimension_numbers<[1], [0], [0], [1], [0, 0, 1, 1], [], []>} : vector<64x64xbf16>, vector<64x128xbf16>, vector<64x128xf32> -> vector<64x128xf32>
    %c0_4 = arith.constant 0 : index
    %c0_5 = arith.constant 0 : index
    %4 = vector.load %arg3[%c0_4, %c0_5] : memref<8x128xf32, #tpu.memory_space<vmem>>, vector<1x128xf32>
    %5 = vector.broadcast %4 : vector<1x128xf32> to vector<64x128xf32>
    %6 = arith.addf %3, %5 : vector<64x128xf32>
    %cst_6 = arith.constant 0.000000e+00 : f32
    %7 = vector.broadcast %cst_6 : f32 to vector<64x128xf32>
    %8 = arith.maximumf %6, %7 : vector<64x128xf32>
    %9 = arith.truncf %8 : vector<64x128xf32> to vector<64x128xbf16>
    %c1 = arith.constant 1 : index
    %c0_7 = arith.constant 0 : index
    %c0_8 = arith.constant 0 : index
    %10 = vector.load %arg2[%c1, %c0_7, %c0_8] : memref<5x128x128xbf16, #tpu.memory_space<vmem>>, vector<1x128x128xbf16>
    %11 = vector.shape_cast %10 : vector<1x128x128xbf16> to vector<128x128xbf16>
    %cst_9 = arith.constant dense<0.000000e+00> : vector<64x128xf32>
    %12 = tpu.matmul %9, %11, %cst_9 {dimension_numbers = #tpu.dot_dimension_numbers<[1], [0], [0], [1], [0, 0, 1, 1], [], []>} : vector<64x128xbf16>, vector<128x128xbf16>, vector<64x128xf32> -> vector<64x128xf32>
    %c1_10 = arith.constant 1 : index
    %c0_11 = arith.constant 0 : index
    %13 = vector.load %arg3[%c1_10, %c0_11] : memref<8x128xf32, #tpu.memory_space<vmem>>, vector<1x128xf32>
    %14 = vector.broadcast %13 : vector<1x128xf32> to vector<64x128xf32>
    %15 = arith.addf %12, %14 : vector<64x128xf32>
    %cst_12 = arith.constant 0.000000e+00 : f32
    %16 = vector.broadcast %cst_12 : f32 to vector<64x128xf32>
    %17 = arith.maximumf %15, %16 : vector<64x128xf32>
    %18 = arith.truncf %17 : vector<64x128xf32> to vector<64x128xbf16>
    %c2 = arith.constant 2 : index
    %c0_13 = arith.constant 0 : index
    %c0_14 = arith.constant 0 : index
    %19 = vector.load %arg2[%c2, %c0_13, %c0_14] : memref<5x128x128xbf16, #tpu.memory_space<vmem>>, vector<1x128x128xbf16>
    %20 = vector.shape_cast %19 : vector<1x128x128xbf16> to vector<128x128xbf16>
    %cst_15 = arith.constant dense<0.000000e+00> : vector<64x128xf32>
    %21 = tpu.matmul %18, %20, %cst_15 {dimension_numbers = #tpu.dot_dimension_numbers<[1], [0], [0], [1], [0, 0, 1, 1], [], []>} : vector<64x128xbf16>, vector<128x128xbf16>, vector<64x128xf32> -> vector<64x128xf32>
    %c2_16 = arith.constant 2 : index
    %c0_17 = arith.constant 0 : index
    %22 = vector.load %arg3[%c2_16, %c0_17] : memref<8x128xf32, #tpu.memory_space<vmem>>, vector<1x128xf32>
    %23 = vector.broadcast %22 : vector<1x128xf32> to vector<64x128xf32>
    %24 = arith.addf %21, %23 : vector<64x128xf32>
    %cst_18 = arith.constant 0.000000e+00 : f32
    %25 = vector.broadcast %cst_18 : f32 to vector<64x128xf32>
    %26 = arith.maximumf %24, %25 : vector<64x128xf32>
    %27 = arith.truncf %26 : vector<64x128xf32> to vector<64x128xbf16>
    %c3 = arith.constant 3 : index
    %c0_19 = arith.constant 0 : index
    %c0_20 = arith.constant 0 : index
    %28 = vector.load %arg2[%c3, %c0_19, %c0_20] : memref<5x128x128xbf16, #tpu.memory_space<vmem>>, vector<1x128x128xbf16>
    %29 = vector.shape_cast %28 : vector<1x128x128xbf16> to vector<128x128xbf16>
    %cst_21 = arith.constant dense<0.000000e+00> : vector<64x128xf32>
    %30 = tpu.matmul %27, %29, %cst_21 {dimension_numbers = #tpu.dot_dimension_numbers<[1], [0], [0], [1], [0, 0, 1, 1], [], []>} : vector<64x128xbf16>, vector<128x128xbf16>, vector<64x128xf32> -> vector<64x128xf32>
    %c3_22 = arith.constant 3 : index
    %c0_23 = arith.constant 0 : index
    %31 = vector.load %arg3[%c3_22, %c0_23] : memref<8x128xf32, #tpu.memory_space<vmem>>, vector<1x128xf32>
    %32 = vector.broadcast %31 : vector<1x128xf32> to vector<64x128xf32>
    %33 = arith.addf %30, %32 : vector<64x128xf32>
    %cst_24 = arith.constant 0.000000e+00 : f32
    %34 = vector.broadcast %cst_24 : f32 to vector<64x128xf32>
    %35 = arith.maximumf %33, %34 : vector<64x128xf32>
    %36 = arith.truncf %35 : vector<64x128xf32> to vector<64x128xbf16>
    %c4 = arith.constant 4 : index
    %c0_25 = arith.constant 0 : index
    %c0_26 = arith.constant 0 : index
    %37 = vector.load %arg2[%c4, %c0_25, %c0_26] : memref<5x128x128xbf16, #tpu.memory_space<vmem>>, vector<1x128x128xbf16>
    %38 = vector.shape_cast %37 : vector<1x128x128xbf16> to vector<128x128xbf16>
    %cst_27 = arith.constant dense<0.000000e+00> : vector<64x128xf32>
    %39 = tpu.matmul %36, %38, %cst_27 {dimension_numbers = #tpu.dot_dimension_numbers<[1], [0], [0], [1], [0, 0, 1, 1], [], []>} : vector<64x128xbf16>, vector<128x128xbf16>, vector<64x128xf32> -> vector<64x128xf32>
    %c4_28 = arith.constant 4 : index
    %c0_29 = arith.constant 0 : index
    %40 = vector.load %arg3[%c4_28, %c0_29] : memref<8x128xf32, #tpu.memory_space<vmem>>, vector<1x128xf32>
    %41 = vector.broadcast %40 : vector<1x128xf32> to vector<64x128xf32>
    %42 = arith.addf %39, %41 : vector<64x128xf32>
    %cst_30 = arith.constant 0.000000e+00 : f32
    %43 = vector.broadcast %cst_30 : f32 to vector<64x128xf32>
    %44 = arith.maximumf %42, %43 : vector<64x128xf32>
    %45 = arith.truncf %44 : vector<64x128xf32> to vector<64x128xbf16>
    %c0_31 = arith.constant 0 : index
    %c0_32 = arith.constant 0 : index
    %46 = vector.load %arg4[%c0_31, %c0_32] : memref<64x128xbf16, #tpu.memory_space<vmem>>, vector<64x128xbf16>
    tpu.vector_store %arg4[%c0_31, %c0_32], %45 {strides = array<i32>} : memref<64x128xbf16, #tpu.memory_space<vmem>>, vector<64x128xbf16>,
    return
  }
  func.func @transform_0(%arg0: i32) -> (i32, i32) {
    %c0_i32 = arith.constant 0 : i32
    %c0_i32_0 = arith.constant 0 : i32
    return %arg0, %c0_i32 : i32, i32
  }
  func.func @transform_1(%arg0: i32) -> (i32, i32, i32) {
    %c0_i32 = arith.constant 0 : i32
    %c0_i32_0 = arith.constant 0 : i32
    %c0_i32_1 = arith.constant 0 : i32
    %c0_i32_2 = arith.constant 0 : i32
    return %c0_i32, %c0_i32_0, %c0_i32_1 : i32, i32, i32
  }
  func.func @transform_2(%arg0: i32) -> (i32, i32) {
    %c0_i32 = arith.constant 0 : i32
    %c0_i32_0 = arith.constant 0 : i32
    %c0_i32_1 = arith.constant 0 : i32
    return %c0_i32, %c0_i32_0 : i32, i32
  }
  func.func @transform_3(%arg0: i32) -> (i32, i32) {
    %c0_i32 = arith.constant 0 : i32
    %c0_i32_0 = arith.constant 0 : i32
    return %arg0, %c0_i32 : i32, i32
  }
}

</mosaic_0001>

<llo_original>
// kernel: tpu_custom_call.1
$region0: #{tpu_custom_call.1}
  #allocation0 [shape = 'u32[]', space=smem, size = 0x4, offset = 0x4, fixed_abs, tag = 'smem constant byte address 0x4 - core index']
  #allocation1 [shape = 'u32[144,128]{1,0:T(1,128)}', space=vmem, size = 0x12000, scoped, tag = 'internal scratch']
  %s0 = inlined_call_operand.vmem [shape: bf16[256,64], index: 0, kind: input, shape index: {}]
  %s1 = inlined_call_operand.hbm [shape: bf16[5,128,128], index: 1, kind: input, shape index: {}]
  %s2 = inlined_call_operand.vmem [shape: f32[8,128], index: 2, kind: input, shape index: {}]
  %s3 = inlined_call_operand.hbm [shape: bf16[256,128], index: 3, kind: output, shape index: {}]
  %s4 = sld [smem:[#allocation0]]
  $region49: #{tpu_custom_call.1} parent=0
    _
  %s6 = ssub.s32 1, %s4
  %s7 = scalar_select 0, %s6, %s4
  $region1: #{tpu_custom_call.1} parent=0
    #allocation2 [shape = 'u8[163840]{0}', space=vmem, size = 0x28000, scoped, tag = 'input window, operand 1, single buffered']
    #allocation3 [shape = 's32[2]{0}', space=sflag, size = 0x8, scoped, tag = 'scoped memory for tpu_custom_call.1']
    #allocation4 [shape = 's32[2]{0}', space=sflag, size = 0x8, scoped, tag = 'scoped memory for tpu_custom_call.1']
    #allocation5 [shape = 'u8[32768]{0}', space=vmem, size = 0x8000, scoped, tag = 'output window, operand 0']
    %8 = vsyncpa [#allocation3], 0
    %9 = vsyncpa [#allocation4], 0
    %s10 = scalar_lea.sflag [#allocation4], 1
    %11 = vsyncpa %s10, 0
    loop: start=0, step=1, limit=6
    $region2: #{tpu_custom_call.1} parent=1 // loop_pre_header
      _
    $region3: #{tpu_custom_call.1} parent=1 // loop_header
      %s13 = sphi 0, %s17
      %p14 = scmp.ge.s32.totalorder %s13, 6
      %s23 = sphi 0, %s25
      %s26 = sphi 0, %s23
      %s27 = sphi 0, %s26
      %s43 = sphi 0, %s27
      %s47 = sphi 0, %s47
      %s49 = sphi 0, %s47
      %s50 = sphi 0, %s49
      %s64 = sphi 0, %s50
      %s68 = sphi 0, %s68
      %s70 = sphi 0, %s68
      %s71 = sphi 0, %s70
      %s85 = sphi 0, %s71
      %s91 = sphi 0, %s93
      %s94 = sphi 0, %s91
      %s95 = sphi 0, %s94
      %s111 = sphi 0, %s95
    $region4: #{tpu_custom_call.1} parent=1 // loop_header_branch
      %16 = sbr.rel (%p14) target = $region8
    $region5: #{tpu_custom_call.1} parent=1 // loop_body
      %s18 = ssub.s32 %s13, 1
      %s19 = ssub.s32 %s13, 2
      %s20 = sadd.s32 %s13, 1
      %s21 = ssub.s32 %s13, %s20
      %p22 = scmp.eq.s32.totalorder %s21, 0
      %s24 = sadd.s32 %s23, 1
      %s25 = scalar_select %p22, %s23, %s24
      %p28 = pneg %p22
      %p29 = scmp.eq.s32.totalorder %s13, 3
      %p30 = por %p28, %p29
      %p31 = scmp.ne.s32.totalorder %s23, %s26
      %p32 = scmp.eq.s32.totalorder %s13, 0
      %p33 = por %p31, %p32
      %p34 = scmp.ne.s32.totalorder %s23, %s26
      %p35 = scmp.eq.s32.totalorder %s18, 3
      %p36 = por %p34, %p35
      %p37 = scmp.ne.s32.totalorder %s26, %s27
      %p38 = scmp.eq.s32.totalorder %s18, 0
      %p39 = por %p37, %p38
      %p40 = scmp.ne.s32.totalorder %s26, %s27
      %p41 = scmp.eq.s32.totalorder %s19, 3
      %p42 = por %p40, %p41
      %p44 = scmp.ne.s32.totalorder %s27, %s43
      %p45 = scmp.eq.s32.totalorder %s19, 0
      %p46 = por %p44, %p45
      %s48 = sadd.s32 %s47, 1
      %p51 = scmp.eq.s32.totalorder %s13, 3
      %p52 = scmp.ne.s32.totalorder %s47, %s49
      %p53 = scmp.eq.s32.totalorder %s13, 0
      %p54 = por %p52, %p53
      %p55 = scmp.ne.s32.totalorder %s47, %s49
      %p56 = scmp.eq.s32.totalorder %s18, 3
      %p57 = por %p55, %p56
      %p58 = scmp.ne.s32.totalorder %s49, %s50
      %p59 = scmp.eq.s32.totalorder %s18, 0
      %p60 = por %p58, %p59
      %p61 = scmp.ne.s32.totalorder %s49, %s50
      %p62 = scmp.eq.s32.totalorder %s19, 3
      %p63 = por %p61, %p62
      %p65 = scmp.ne.s32.totalorder %s50, %s64
      %p66 = scmp.eq.s32.totalorder %s19, 0
      %p67 = por %p65, %p66
      %s69 = sadd.s32 %s68, 1
      %p72 = scmp.eq.s32.totalorder %s13, 3
      %p73 = scmp.ne.s32.totalorder %s68, %s70
      %p74 = scmp.eq.s32.totalorder %s13, 0
      %p75 = por %p73, %p74
      %p76 = scmp.ne.s32.totalorder %s68, %s70
      %p77 = scmp.eq.s32.totalorder %s18, 3
      %p78 = por %p76, %p77
      %p79 = scmp.ne.s32.totalorder %s70, %s71
      %p80 = scmp.eq.s32.totalorder %s18, 0
      %p81 = por %p79, %p80
      %p82 = scmp.ne.s32.totalorder %s70, %s71
      %p83 = scmp.eq.s32.totalorder %s19, 3
      %p84 = por %p82, %p83
      %p86 = scmp.ne.s32.totalorder %s71, %s85
      %p87 = scmp.eq.s32.totalorder %s19, 0
      %p88 = por %p86, %p87
      %s89 = ssub.s32 %s13, %s20
      %p90 = scmp.eq.s32.totalorder %s89, 0
      %s92 = sadd.s32 %s91, 1
      %s93 = scalar_select %p90, %s91, %s92
      %p96 = pneg %p90
      %p97 = scmp.eq.s32.totalorder %s13, 3
      %p98 = por %p96, %p97
      %p99 = scmp.ne.s32.totalorder %s91, %s94
      %p100 = scmp.eq.s32.totalorder %s13, 0
      %p101 = por %p99, %p100
      %p102 = scmp.ne.s32.totalorder %s91, %s94
      %p103 = scmp.eq.s32.totalorder %s18, 3
      %p104 = por %p102, %p103
      %p105 = scmp.ne.s32.totalorder %s94, %s95
      %p106 = scmp.eq.s32.totalorder %s18, 0
      %p107 = por %p105, %p106
      %p108 = scmp.ne.s32.totalorder %s94, %s95
      %p109 = scmp.eq.s32.totalorder %s19, 3
      %p110 = por %p108, %p109
      %p112 = scmp.ne.s32.totalorder %s95, %s111
      %p113 = scmp.eq.s32.totalorder %s19, 0
      %p114 = por %p112, %p113
      %p115 = scmp.le.s32.totalorder 1, %s13
      %p116 = scmp.lt.s32.totalorder %s13, 5
      %p117 = pnand %p115, %p116
      %p118 = pneg %p117
      // Predicated region
      $region9: #{tpu_custom_call.1} parent=5 // pred_check
        _
      $region10: #{tpu_custom_call.1} parent=5 // pred_check_branch
        %120 = sbr.rel (%p117) target = $region12
      $region11: #{tpu_custom_call.1} parent=5 // pred_region
        %s121 = ssub.s32 %s13, 1
        // Predicated region
        $region13: #{tpu_custom_call.1} parent=11 // pred_check
          %p122 = pneg %p60
        $region14: #{tpu_custom_call.1} parent=11 // pred_check_branch
          %124 = sbr.rel (%p122) target = $region16
        $region15: #{tpu_custom_call.1} parent=11 // pred_region
          %s126 = ssub.s32 5120, 5120
          %127 = vsyncadd [#allocation3], %s126
          %s128 = sshll.u32 [#allocation2], 4
          %s129 = int_to_ptr.vmem [resolvable:$true] %s128
          %134 = dma.hbm_to_vmem [thread:$0]  %s1, 5120, %s129, [#allocation3], 64, 64, 4
        $region16: #{tpu_custom_call.1} parent=11 // pred_fallthru
          _
        // Predicated region
        $region17: #{tpu_custom_call.1} parent=11 // pred_check
          %p135 = pneg %p81
        $region18: #{tpu_custom_call.1} parent=11 // pred_check_branch
          %137 = sbr.rel (%p135) target = $region20
        $region19: #{tpu_custom_call.1} parent=11 // pred_region
          _
        $region20: #{tpu_custom_call.1} parent=11 // pred_fallthru
          _
      $region12: #{tpu_custom_call.1} parent=5 // pred_fallthru
        _
      %p138 = scmp.lt.s32.totalorder %s13, 4
      // Predicated region
      $region21: #{tpu_custom_call.1} parent=5 // pred_check
        %p139 = pneg %p138
      $region22: #{tpu_custom_call.1} parent=5 // pred_check_branch
        %141 = sbr.rel (%p139) target = $region24
      $region23: #{tpu_custom_call.1} parent=5 // pred_region
        // Predicated region
        $region25: #{tpu_custom_call.1} parent=23 // pred_check
          %p142 = pneg %p33
        $region26: #{tpu_custom_call.1} parent=23 // pred_check_branch
          %144 = sbr.rel (%p142) target = $region28
        $region27: #{tpu_custom_call.1} parent=23 // pred_region
          %s145 = smul.u32 8, %s13
          %p146 = scmp.lt.s32.totalorder %s145, 31
          %s147 = scalar_select %p146, %s145, 31
          %s148 = smul.addr %s147, 4
          %s149 = scalar_lea.vmem %s0, %s148
          %s150 = smul.u32 8, %s13
        $region28: #{tpu_custom_call.1} parent=23 // pred_fallthru
          _
      $region24: #{tpu_custom_call.1} parent=5 // pred_fallthru
        _
      %p151 = scmp.le.s32.totalorder 1, %s13
      %p152 = scmp.lt.s32.totalorder %s13, 5
      %p153 = pnand %p151, %p152
      %p154 = pneg %p153
      // Predicated region
      $region29: #{tpu_custom_call.1} parent=5 // pred_check
        _
      $region30: #{tpu_custom_call.1} parent=5 // pred_check_branch
        %156 = sbr.rel (%p153) target = $region32
      $region31: #{tpu_custom_call.1} parent=5 // pred_region
        %s157 = ssub.s32 %s13, 1
        // Predicated region
        $region33: #{tpu_custom_call.1} parent=31 // pred_check
          %p158 = pneg %p60
        $region34: #{tpu_custom_call.1} parent=31 // pred_check_branch
          %160 = sbr.rel (%p158) target = $region36
        $region35: #{tpu_custom_call.1} parent=31 // pred_region
          %161 = dma.done [#allocation3], 5120
        $region36: #{tpu_custom_call.1} parent=31 // pred_fallthru
          _
        %s162 = smul.u32 8, %s18
        %p163 = scmp.lt.s32.totalorder %s162, 31
        %s164 = scalar_select %p163, %s162, 31
        %s165 = smul.addr %s164, 4
        %s166 = scalar_lea.vmem %s0, %s165
        %p167 = pneg %p39
        %p168 = pneg %p36
        %p169 = pneg %p60
        %p170 = pneg %p57
        %p171 = pneg %p81
        %p172 = pneg %p78
        %p173 = pneg %p107
        %p174 = pneg %p104
        %s175 = sand.u32 %s94, 1
        %s176 = scalar_lea.sflag [#allocation4], %s175
        %s177 = sand.u32 %s94, 1
        %s178 = smul.addr %s177, 32
        %s179 = scalar_lea.vmem [#allocation5], %s178
        %s180 = smul.u32 8, %s18
        %p181 = scmp.lt.s32.totalorder %s180, 31
        %s182 = scalar_select %p181, %s180, 31
        %s183 = smul.addr %s182, 4
        %s184 = scalar_lea.vmem %s0, %s183
        %s185 = smul.u32 8, %s18
        %s186 = smul.u32 8, %s18
        %v188 = vld [vmem:[%s184] sm:$0xf]
        %v189 = vld [vmem:[%s184 + $0x4] sm:$0xf]
        %v190 = vld [vmem:[%s184 + $0x8] sm:$0xf]
        %v191 = vld [vmem:[%s184 + $0xc] sm:$0xf]
        %v192 = vld [vmem:[%s184 + $0x10] sm:$0xf]
        %v193 = vld [vmem:[%s184 + $0x14] sm:$0xf]
        %v194 = vld [vmem:[%s184 + $0x18] sm:$0xf]
        %v195 = vld [vmem:[%s184 + $0x1c] sm:$0xf]
        %v196 = vld [vmem:[#allocation2] sm:$0xf]
        %v197 = vld [vmem:[#allocation2 + $0x4] sm:$0xf]
        %v198 = vld [vmem:[#allocation2 + $0x8] sm:$0xf]
        %v199 = vld [vmem:[#allocation2 + $0xc] sm:$0xf]
        %v200 = vld [vmem:[#allocation2 + $0x10] sm:$0xf]
        %v201 = vld [vmem:[#allocation2 + $0x14] sm:$0xf]
        %v202 = vld [vmem:[#allocation2 + $0x18] sm:$0xf]
        %v203 = vld [vmem:[#allocation2 + $0x1c] sm:$0xf]
        %v204 = vld [vmem:[%s2] sm:$0x1]
        %v205 = vlaneseq
        %v206 = vshrl.u32 %v205, 7
        %v207 = vsub.s32 0, %v206
        %v208 = vrot.slane %v204, %v207
        %v217 = vunpack.c.l.b16 %v188
        %v218 = vunpack.c.l.b16 %v189
        %v219 = vunpack.c.l.b16 %v190
        %v220 = vunpack.c.l.b16 %v191
        %v221 = vunpack.c.l.b16 %v192
        %v222 = vunpack.c.l.b16 %v193
        %v223 = vunpack.c.l.b16 %v194
        %v224 = vunpack.c.l.b16 %v195
        %v225 = vpack.c.b16 %v218, %v217
        %v226 = vpack.c.b16 %v220, %v219
        %v227 = vpack.c.b16 %v222, %v221
        %v228 = vpack.c.b16 %v224, %v223
        %v237 = vunpack.c.l.b16 %v196
        %v238 = vunpack.c.l.b16 %v197
        %v239 = vunpack.c.l.b16 %v198
        %v240 = vunpack.c.l.b16 %v199
        %v241 = vunpack.c.l.b16 %v200
        %v242 = vunpack.c.l.b16 %v201
        %v243 = vunpack.c.l.b16 %v202
        %v244 = vunpack.c.l.b16 %v203
        %v245 = vpack.c.b16 %v238, %v237
        %v246 = vpack.c.b16 %v240, %v239
        %v247 = vpack.c.b16 %v242, %v241
        %v248 = vpack.c.b16 %v244, %v243
        %vm253 = vcmask 523264
        %v255 = vsel %vm253, %v225, 0
        %v258 = vsel %vm253, %v226, 0
        %v261 = vsel %vm253, %v227, 0
        %v264 = vsel %vm253, %v228, 0
        %266 = vmatprep.subr.bf16.mxu0 0
        %267 = vmatpush1.bf16.msra.mxu0 %v245
        %268 = vmatprep.subr.bf16.mxu0 0
        %269 = vmatpush1.bf16.msra.mxu0 %v246
        %270 = vmatprep.subr.bf16.mxu0 0
        %271 = vmatpush1.bf16.msra.mxu0 %v247
        %272 = vmatprep.subr.bf16.mxu0 0
        %273 = vmatpush1.bf16.msra.mxu0 %v248
        %274 = vmatprep.subr.bf16.mxu0 0
        %275 = vmatpush1.bf16.msra.mxu0 0
        %276 = vmatprep.subr.bf16.mxu0 0
        %277 = vmatpush1.bf16.msra.mxu0 0
        %278 = vmatprep.subr.bf16.mxu0 0
        %279 = vmatpush1.bf16.msra.mxu0 0
        %280 = vmatprep.subr.bf16.mxu0 0
        %281 = vmatpush1.bf16.msra.mxu0 0
        %282 = vmatprep.subr.bf16.mxu0 0
        %283 = vmatpush1.bf16.msra.mxu0 0
        %284 = vmatprep.subr.bf16.mxu0 0
        %285 = vmatpush1.bf16.msra.mxu0 0
        %286 = vmatprep.subr.bf16.mxu0 0
        %287 = vmatpush1.bf16.msra.mxu0 0
        %288 = vmatprep.subr.bf16.mxu0 0
        %289 = vmatpush1.bf16.msra.mxu0 0
        %290 = vmatprep.subr.bf16.mxu0 0
        %291 = vmatpush1.bf16.msra.mxu0 0
        %292 = vmatprep.subr.bf16.mxu0 0
        %293 = vmatpush1.bf16.msra.mxu0 0
        %294 = vmatprep.subr.bf16.mxu0 0
        %295 = vmatpush1.bf16.msra.mxu0 0
        %296 = vmatprep.subr.bf16.mxu0 0
        %297 = vmatpush1.bf16.msra.mxu0 0
        %298 = vmatprep.mubr.bf16.mxu0 0
        %299 = vmatmul.mubr.bf16.gmra.mrb[0].mxu0 %v255
        %v300 = vpop.f32.mrb[0].mxu0
        %v301 = vadd.f32 %v208, %v300
        %v302 = vpop.f32.mrb[0].mxu0
        %v303 = vpop.f32.mrb[0].mxu0
        %v304 = vadd.f32 %v208, %v303
        %v305 = vpop.f32.mrb[0].mxu0
        %306 = vmatprep.mubr.bf16.mxu0 0
        %307 = vmatmul.mubr.bf16.gmra.mrb[0].mxu0 %v258
        %v308 = vpop.f32.mrb[0].mxu0
        %v309 = vadd.f32 %v208, %v308
        %v310 = vpop.f32.mrb[0].mxu0
        %v311 = vpop.f32.mrb[0].mxu0
        %v312 = vadd.f32 %v208, %v311
        %v313 = vpop.f32.mrb[0].mxu0
        %314 = vmatprep.mubr.bf16.mxu0 0
        %315 = vmatmul.mubr.bf16.gmra.mrb[0].mxu0 %v261
        %v316 = vpop.f32.mrb[0].mxu0
        %v317 = vadd.f32 %v208, %v316
        %v318 = vpop.f32.mrb[0].mxu0
        %v319 = vpop.f32.mrb[0].mxu0
        %v320 = vadd.f32 %v208, %v319
        %v321 = vpop.f32.mrb[0].mxu0
        %322 = vmatprep.mubr.bf16.mxu0 0
        %323 = vmatmul.mubr.bf16.gmra.mrb[0].mxu0 %v264
        %v324 = vpop.f32.mrb[0].mxu0
        %v325 = vadd.f32 %v208, %v324
        %v326 = vpop.f32.mrb[0].mxu0
        %v327 = vpop.f32.mrb[0].mxu0
        %v328 = vadd.f32 %v208, %v327
        %v329 = vpop.f32.mrb[0].mxu0
        %330 = vdwg.mxu0
        %v331 = vmax.f32 %v301, 0.0
        %v332 = vmax.f32 %v304, 0.0
        %v333 = vmax.f32 %v309, 0.0
        %v334 = vmax.f32 %v312, 0.0
        %v335 = vmax.f32 %v317, 0.0
        %v336 = vmax.f32 %v320, 0.0
        %v337 = vmax.f32 %v325, 0.0
        %v338 = vmax.f32 %v328, 0.0
        %v339 = vpack.c.bf16 %v332, %v331
        %v340 = vpack.c.bf16 %v334, %v333
        %v341 = vpack.c.bf16 %v336, %v335
        %v342 = vpack.c.bf16 %v338, %v337
        %s343 = scalar_lea.vmem [#allocation2], 64
        %v344 = vld [vmem:[%s343] sm:$0xf]
        %v345 = vld [vmem:[%s343 + $0x4] sm:$0xf]
        %v346 = vld [vmem:[%s343 + $0x8] sm:$0xf]
        %v347 = vld [vmem:[%s343 + $0xc] sm:$0xf]
        %v348 = vld [vmem:[%s343 + $0x10] sm:$0xf]
        %v349 = vld [vmem:[%s343 + $0x14] sm:$0xf]
        %v350 = vld [vmem:[%s343 + $0x18] sm:$0xf]
        %v351 = vld [vmem:[%s343 + $0x1c] sm:$0xf]
        %v352 = vld [vmem:[%s343 + $0x20] sm:$0xf]
        %v353 = vld [vmem:[%s343 + $0x24] sm:$0xf]
        %v354 = vld [vmem:[%s343 + $0x28] sm:$0xf]
        %v355 = vld [vmem:[%s343 + $0x2c] sm:$0xf]
        %v356 = vld [vmem:[%s343 + $0x30] sm:$0xf]
        %v357 = vld [vmem:[%s343 + $0x34] sm:$0xf]
        %v358 = vld [vmem:[%s343 + $0x38] sm:$0xf]
        %v359 = vld [vmem:[%s343 + $0x3c] sm:$0xf]
        %v360 = vld [vmem:[%s2 + $0x1] sm:$0x1]
        %v361 = vlaneseq
        %v362 = vshrl.u32 %v361, 7
        %v363 = vsub.s32 0, %v362
        %v364 = vrot.slane %v360, %v363
        %v381 = vunpack.c.l.b16 %v344
        %v382 = vunpack.c.l.b16 %v345
        %v383 = vunpack.c.l.b16 %v346
        %v384 = vunpack.c.l.b16 %v347
        %v385 = vunpack.c.l.b16 %v348
        %v386 = vunpack.c.l.b16 %v349
        %v387 = vunpack.c.l.b16 %v350
        %v388 = vunpack.c.l.b16 %v351
        %v389 = vunpack.c.l.b16 %v352
        %v390 = vunpack.c.l.b16 %v353
        %v391 = vunpack.c.l.b16 %v354
        %v392 = vunpack.c.l.b16 %v355
        %v393 = vunpack.c.l.b16 %v356
        %v394 = vunpack.c.l.b16 %v357
        %v395 = vunpack.c.l.b16 %v358
        %v396 = vunpack.c.l.b16 %v359
        %v397 = vpack.c.b16 %v382, %v381
        %v398 = vpack.c.b16 %v384, %v383
        %v399 = vpack.c.b16 %v386, %v385
        %v400 = vpack.c.b16 %v388, %v387
        %v401 = vpack.c.b16 %v390, %v389
        %v402 = vpack.c.b16 %v392, %v391
        %v403 = vpack.c.b16 %v394, %v393
        %v404 = vpack.c.b16 %v396, %v395
        %413 = vmatprep.subr.bf16.mxu0 0
        %414 = vmatpush1.bf16.msra.mxu0 %v397
        %415 = vmatprep.subr.bf16.mxu0 0
        %416 = vmatpush1.bf16.msra.mxu0 %v398
        %417 = vmatprep.subr.bf16.mxu0 0
        %418 = vmatpush1.bf16.msra.mxu0 %v399
        %419 = vmatprep.subr.bf16.mxu0 0
        %420 = vmatpush1.bf16.msra.mxu0 %v400
        %421 = vmatprep.subr.bf16.mxu0 0
        %422 = vmatpush1.bf16.msra.mxu0 %v401
        %423 = vmatprep.subr.bf16.mxu0 0
        %424 = vmatpush1.bf16.msra.mxu0 %v402
        %425 = vmatprep.subr.bf16.mxu0 0
        %426 = vmatpush1.bf16.msra.mxu0 %v403
        %427 = vmatprep.subr.bf16.mxu0 0
        %428 = vmatpush1.bf16.msra.mxu0 %v404
        %429 = vmatprep.subr.bf16.mxu0 0
        %430 = vmatpush1.bf16.msra.mxu0 0
        %431 = vmatprep.subr.bf16.mxu0 0
        %432 = vmatpush1.bf16.msra.mxu0 0
        %433 = vmatprep.subr.bf16.mxu0 0
        %434 = vmatpush1.bf16.msra.mxu0 0
        %435 = vmatprep.subr.bf16.mxu0 0
        %436 = vmatpush1.bf16.msra.mxu0 0
        %437 = vmatprep.subr.bf16.mxu0 0
        %438 = vmatpush1.bf16.msra.mxu0 0
        %439 = vmatprep.subr.bf16.mxu0 0
        %440 = vmatpush1.bf16.msra.mxu0 0
        %441 = vmatprep.subr.bf16.mxu0 0
        %442 = vmatpush1.bf16.msra.mxu0 0
        %443 = vmatprep.subr.bf16.mxu0 0
        %444 = vmatpush1.bf16.msra.mxu0 0
        %445 = vmatprep.mubr.bf16.mxu0 0
        %446 = vmatmul.mubr.bf16.gmra.mrb[0].mxu0 %v339
        %v447 = vpop.f32.mrb[0].mxu0
        %v448 = vadd.f32 %v364, %v447
        %v449 = vpop.f32.mrb[0].mxu0
        %v450 = vpop.f32.mrb[0].mxu0
        %v451 = vadd.f32 %v364, %v450
        %v452 = vpop.f32.mrb[0].mxu0
        %453 = vmatprep.mubr.bf16.mxu0 0
        %454 = vmatmul.mubr.bf16.gmra.mrb[0].mxu0 %v340
        %v455 = vpop.f32.mrb[0].mxu0
        %v456 = vadd.f32 %v364, %v455
        %v457 = vpop.f32.mrb[0].mxu0
        %v458 = vpop.f32.mrb[0].mxu0
        %v459 = vadd.f32 %v364, %v458
        %v460 = vpop.f32.mrb[0].mxu0
        %461 = vmatprep.mubr.bf16.mxu0 0
        %462 = vmatmul.mubr.bf16.gmra.mrb[0].mxu0 %v341
        %v463 = vpop.f32.mrb[0].mxu0
        %v464 = vadd.f32 %v364, %v463
        %v465 = vpop.f32.mrb[0].mxu0
        %v466 = vpop.f32.mrb[0].mxu0
        %v467 = vadd.f32 %v364, %v466
        %v468 = vpop.f32.mrb[0].mxu0
        %469 = vmatprep.mubr.bf16.mxu0 0
        %470 = vmatmul.mubr.bf16.gmra.mrb[0].mxu0 %v342
        %v471 = vpop.f32.mrb[0].mxu0
        %v472 = vadd.f32 %v364, %v471
        %v473 = vpop.f32.mrb[0].mxu0
        %v474 = vpop.f32.mrb[0].mxu0
        %v475 = vadd.f32 %v364, %v474
        %v476 = vpop.f32.mrb[0].mxu0
        %477 = vdwg.mxu0
        %v478 = vmax.f32 %v448, 0.0
        %v479 = vmax.f32 %v451, 0.0
        %v480 = vmax.f32 %v456, 0.0
        %v481 = vmax.f32 %v459, 0.0
        %v482 = vmax.f32 %v464, 0.0
        %v483 = vmax.f32 %v467, 0.0
        %v484 = vmax.f32 %v472, 0.0
        %v485 = vmax.f32 %v475, 0.0
        %v486 = vpack.c.bf16 %v479, %v478
        %v487 = vpack.c.bf16 %v481, %v480
        %v488 = vpack.c.bf16 %v483, %v482
        %v489 = vpack.c.bf16 %v485, %v484
        %s490 = scalar_lea.vmem [#allocation2], 128
        %v491 = vld [vmem:[%s490] sm:$0xf]
        %v492 = vld [vmem:[%s490 + $0x4] sm:$0xf]
        %v493 = vld [vmem:[%s490 + $0x8] sm:$0xf]
        %v494 = vld [vmem:[%s490 + $0xc] sm:$0xf]
        %v495 = vld [vmem:[%s490 + $0x10] sm:$0xf]
        %v496 = vld [vmem:[%s490 + $0x14] sm:$0xf]
        %v497 = vld [vmem:[%s490 + $0x18] sm:$0xf]
        %v498 = vld [vmem:[%s490 + $0x1c] sm:$0xf]
        %v499 = vld [vmem:[%s490 + $0x20] sm:$0xf]
        %v500 = vld [vmem:[%s490 + $0x24] sm:$0xf]
        %v501 = vld [vmem:[%s490 + $0x28] sm:$0xf]
        %v502 = vld [vmem:[%s490 + $0x2c] sm:$0xf]
        %v503 = vld [vmem:[%s490 + $0x30] sm:$0xf]
        %v504 = vld [vmem:[%s490 + $0x34] sm:$0xf]
        %v505 = vld [vmem:[%s490 + $0x38] sm:$0xf]
        %v506 = vld [vmem:[%s490 + $0x3c] sm:$0xf]
        %v507 = vld [vmem:[%s2 + $0x2] sm:$0x1]
        %v508 = vlaneseq
        %v509 = vshrl.u32 %v508, 7
        %v510 = vsub.s32 0, %v509
        %v511 = vrot.slane %v507, %v510
        %v528 = vunpack.c.l.b16 %v491
        %v529 = vunpack.c.l.b16 %v492
        %v530 = vunpack.c.l.b16 %v493
        %v531 = vunpack.c.l.b16 %v494
        %v532 = vunpack.c.l.b16 %v495
        %v533 = vunpack.c.l.b16 %v496
        %v534 = vunpack.c.l.b16 %v497
        %v535 = vunpack.c.l.b16 %v498
        %v536 = vunpack.c.l.b16 %v499
        %v537 = vunpack.c.l.b16 %v500
        %v538 = vunpack.c.l.b16 %v501
        %v539 = vunpack.c.l.b16 %v502
        %v540 = vunpack.c.l.b16 %v503
        %v541 = vunpack.c.l.b16 %v504
        %v542 = vunpack.c.l.b16 %v505
        %v543 = vunpack.c.l.b16 %v506
        %v544 = vpack.c.b16 %v529, %v528
        %v545 = vpack.c.b16 %v531, %v530
        %v546 = vpack.c.b16 %v533, %v532
        %v547 = vpack.c.b16 %v535, %v534
        %v548 = vpack.c.b16 %v537, %v536
        %v549 = vpack.c.b16 %v539, %v538
        %v550 = vpack.c.b16 %v541, %v540
        %v551 = vpack.c.b16 %v543, %v542
        %560 = vmatprep.subr.bf16.mxu0 0
        %561 = vmatpush1.bf16.msra.mxu0 %v544
        %562 = vmatprep.subr.bf16.mxu0 0
        %563 = vmatpush1.bf16.msra.mxu0 %v545
        %564 = vmatprep.subr.bf16.mxu0 0
        %565 = vmatpush1.bf16.msra.mxu0 %v546
        %566 = vmatprep.subr.bf16.mxu0 0
        %567 = vmatpush1.bf16.msra.mxu0 %v547
        %568 = vmatprep.subr.bf16.mxu0 0
        %569 = vmatpush1.bf16.msra.mxu0 %v548
        %570 = vmatprep.subr.bf16.mxu0 0
        %571 = vmatpush1.bf16.msra.mxu0 %v549
        %572 = vmatprep.subr.bf16.mxu0 0
        %573 = vmatpush1.bf16.msra.mxu0 %v550
        %574 = vmatprep.subr.bf16.mxu0 0
        %575 = vmatpush1.bf16.msra.mxu0 %v551
        %576 = vmatprep.subr.bf16.mxu0 0
        %577 = vmatpush1.bf16.msra.mxu0 0
        %578 = vmatprep.subr.bf16.mxu0 0
        %579 = vmatpush1.bf16.msra.mxu0 0
        %580 = vmatprep.subr.bf16.mxu0 0
        %581 = vmatpush1.bf16.msra.mxu0 0
        %582 = vmatprep.subr.bf16.mxu0 0
        %583 = vmatpush1.bf16.msra.mxu0 0
        %584 = vmatprep.subr.bf16.mxu0 0
        %585 = vmatpush1.bf16.msra.mxu0 0
        %586 = vmatprep.subr.bf16.mxu0 0
        %587 = vmatpush1.bf16.msra.mxu0 0
        %588 = vmatprep.subr.bf16.mxu0 0
        %589 = vmatpush1.bf16.msra.mxu0 0
        %590 = vmatprep.subr.bf16.mxu0 0
        %591 = vmatpush1.bf16.msra.mxu0 0
        %592 = vmatprep.mubr.bf16.mxu0 0
        %593 = vmatmul.mubr.bf16.gmra.mrb[0].mxu0 %v486
        %v594 = vpop.f32.mrb[0].mxu0
        %v595 = vadd.f32 %v511, %v594
        %v596 = vpop.f32.mrb[0].mxu0
        %v597 = vpop.f32.mrb[0].mxu0
        %v598 = vadd.f32 %v511, %v597
        %v599 = vpop.f32.mrb[0].mxu0
        %600 = vmatprep.mubr.bf16.mxu0 0
        %601 = vmatmul.mubr.bf16.gmra.mrb[0].mxu0 %v487
        %v602 = vpop.f32.mrb[0].mxu0
        %v603 = vadd.f32 %v511, %v602
        %v604 = vpop.f32.mrb[0].mxu0
        %v605 = vpop.f32.mrb[0].mxu0
        %v606 = vadd.f32 %v511, %v605
        %v607 = vpop.f32.mrb[0].mxu0
        %608 = vmatprep.mubr.bf16.mxu0 0
        %609 = vmatmul.mubr.bf16.gmra.mrb[0].mxu0 %v488
        %v610 = vpop.f32.mrb[0].mxu0
        %v611 = vadd.f32 %v511, %v610
        %v612 = vpop.f32.mrb[0].mxu0
        %v613 = vpop.f32.mrb[0].mxu0
        %v614 = vadd.f32 %v511, %v613
        %v615 = vpop.f32.mrb[0].mxu0
        %616 = vmatprep.mubr.bf16.mxu0 0
        %617 = vmatmul.mubr.bf16.gmra.mrb[0].mxu0 %v489
        %v618 = vpop.f32.mrb[0].mxu0
        %v619 = vadd.f32 %v511, %v618
        %v620 = vpop.f32.mrb[0].mxu0
        %v621 = vpop.f32.mrb[0].mxu0
        %v622 = vadd.f32 %v511, %v621
        %v623 = vpop.f32.mrb[0].mxu0
        %624 = vdwg.mxu0
        %v625 = vmax.f32 %v595, 0.0
        %v626 = vmax.f32 %v598, 0.0
        %v627 = vmax.f32 %v603, 0.0
        %v628 = vmax.f32 %v606, 0.0
        %v629 = vmax.f32 %v611, 0.0
        %v630 = vmax.f32 %v614, 0.0
        %v631 = vmax.f32 %v619, 0.0
        %v632 = vmax.f32 %v622, 0.0
        %v633 = vpack.c.bf16 %v626, %v625
        %v634 = vpack.c.bf16 %v628, %v627
        %v635 = vpack.c.bf16 %v630, %v629
        %v636 = vpack.c.bf16 %v632, %v631
        %s637 = scalar_lea.vmem [#allocation2], 192
        %v638 = vld [vmem:[%s637] sm:$0xf]
        %v639 = vld [vmem:[%s637 + $0x4] sm:$0xf]
        %v640 = vld [vmem:[%s637 + $0x8] sm:$0xf]
        %v641 = vld [vmem:[%s637 + $0xc] sm:$0xf]
        %v642 = vld [vmem:[%s637 + $0x10] sm:$0xf]
        %v643 = vld [vmem:[%s637 + $0x14] sm:$0xf]
        %v644 = vld [vmem:[%s637 + $0x18] sm:$0xf]
        %v645 = vld [vmem:[%s637 + $0x1c] sm:$0xf]
        %v646 = vld [vmem:[%s637 + $0x20] sm:$0xf]
        %v647 = vld [vmem:[%s637 + $0x24] sm:$0xf]
        %v648 = vld [vmem:[%s637 + $0x28] sm:$0xf]
        %v649 = vld [vmem:[%s637 + $0x2c] sm:$0xf]
        %v650 = vld [vmem:[%s637 + $0x30] sm:$0xf]
        %v651 = vld [vmem:[%s637 + $0x34] sm:$0xf]
        %v652 = vld [vmem:[%s637 + $0x38] sm:$0xf]
        %v653 = vld [vmem:[%s637 + $0x3c] sm:$0xf]
        %v654 = vld [vmem:[%s2 + $0x3] sm:$0x1]
        %v655 = vlaneseq
        %v656 = vshrl.u32 %v655, 7
        %v657 = vsub.s32 0, %v656
        %v658 = vrot.slane %v654, %v657
        %v675 = vunpack.c.l.b16 %v638
        %v676 = vunpack.c.l.b16 %v639
        %v677 = vunpack.c.l.b16 %v640
        %v678 = vunpack.c.l.b16 %v641
        %v679 = vunpack.c.l.b16 %v642
        %v680 = vunpack.c.l.b16 %v643
        %v681 = vunpack.c.l.b16 %v644
        %v682 = vunpack.c.l.b16 %v645
        %v683 = vunpack.c.l.b16 %v646
        %v684 = vunpack.c.l.b16 %v647
        %v685 = vunpack.c.l.b16 %v648
        %v686 = vunpack.c.l.b16 %v649
        %v687 = vunpack.c.l.b16 %v650
        %v688 = vunpack.c.l.b16 %v651
        %v689 = vunpack.c.l.b16 %v652
        %v690 = vunpack.c.l.b16 %v653
        %v691 = vpack.c.b16 %v676, %v675
        %v692 = vpack.c.b16 %v678, %v677
        %v693 = vpack.c.b16 %v680, %v679
        %v694 = vpack.c.b16 %v682, %v681
        %v695 = vpack.c.b16 %v684, %v683
        %v696 = vpack.c.b16 %v686, %v685
        %v697 = vpack.c.b16 %v688, %v687
        %v698 = vpack.c.b16 %v690, %v689
        %707 = vmatprep.subr.bf16.mxu0 0
        %708 = vmatpush1.bf16.msra.mxu0 %v691
        %709 = vmatprep.subr.bf16.mxu0 0
        %710 = vmatpush1.bf16.msra.mxu0 %v692
        %711 = vmatprep.subr.bf16.mxu0 0
        %712 = vmatpush1.bf16.msra.mxu0 %v693
        %713 = vmatprep.subr.bf16.mxu0 0
        %714 = vmatpush1.bf16.msra.mxu0 %v694
        %715 = vmatprep.subr.bf16.mxu0 0
        %716 = vmatpush1.bf16.msra.mxu0 %v695
        %717 = vmatprep.subr.bf16.mxu0 0
        %718 = vmatpush1.bf16.msra.mxu0 %v696
        %719 = vmatprep.subr.bf16.mxu0 0
        %720 = vmatpush1.bf16.msra.mxu0 %v697
        %721 = vmatprep.subr.bf16.mxu0 0
        %722 = vmatpush1.bf16.msra.mxu0 %v698
        %723 = vmatprep.subr.bf16.mxu0 0
        %724 = vmatpush1.bf16.msra.mxu0 0
        %725 = vmatprep.subr.bf16.mxu0 0
        %726 = vmatpush1.bf16.msra.mxu0 0
        %727 = vmatprep.subr.bf16.mxu0 0
        %728 = vmatpush1.bf16.msra.mxu0 0
        %729 = vmatprep.subr.bf16.mxu0 0
        %730 = vmatpush1.bf16.msra.mxu0 0
        %731 = vmatprep.subr.bf16.mxu0 0
        %732 = vmatpush1.bf16.msra.mxu0 0
        %733 = vmatprep.subr.bf16.mxu0 0
        %734 = vmatpush1.bf16.msra.mxu0 0
        %735 = vmatprep.subr.bf16.mxu0 0
        %736 = vmatpush1.bf16.msra.mxu0 0
        %737 = vmatprep.subr.bf16.mxu0 0
        %738 = vmatpush1.bf16.msra.mxu0 0
        %739 = vmatprep.mubr.bf16.mxu0 0
        %740 = vmatmul.mubr.bf16.gmra.mrb[0].mxu0 %v633
        %v741 = vpop.f32.mrb[0].mxu0
        %v742 = vadd.f32 %v658, %v741
        %v743 = vpop.f32.mrb[0].mxu0
        %v744 = vpop.f32.mrb[0].mxu0
        %v745 = vadd.f32 %v658, %v744
        %v746 = vpop.f32.mrb[0].mxu0
        %747 = vmatprep.mubr.bf16.mxu0 0
        %748 = vmatmul.mubr.bf16.gmra.mrb[0].mxu0 %v634
        %v749 = vpop.f32.mrb[0].mxu0
        %v750 = vadd.f32 %v658, %v749
        %v751 = vpop.f32.mrb[0].mxu0
        %v752 = vpop.f32.mrb[0].mxu0
        %v753 = vadd.f32 %v658, %v752
        %v754 = vpop.f32.mrb[0].mxu0
        %755 = vmatprep.mubr.bf16.mxu0 0
        %756 = vmatmul.mubr.bf16.gmra.mrb[0].mxu0 %v635
        %v757 = vpop.f32.mrb[0].mxu0
        %v758 = vadd.f32 %v658, %v757
        %v759 = vpop.f32.mrb[0].mxu0
        %v760 = vpop.f32.mrb[0].mxu0
        %v761 = vadd.f32 %v658, %v760
        %v762 = vpop.f32.mrb[0].mxu0
        %763 = vmatprep.mubr.bf16.mxu0 0
        %764 = vmatmul.mubr.bf16.gmra.mrb[0].mxu0 %v636
        %v765 = vpop.f32.mrb[0].mxu0
        %v766 = vadd.f32 %v658, %v765
        %v767 = vpop.f32.mrb[0].mxu0
        %v768 = vpop.f32.mrb[0].mxu0
        %v769 = vadd.f32 %v658, %v768
        %v770 = vpop.f32.mrb[0].mxu0
        %771 = vdwg.mxu0
        %v772 = vmax.f32 %v742, 0.0
        %v773 = vmax.f32 %v745, 0.0
        %v774 = vmax.f32 %v750, 0.0
        %v775 = vmax.f32 %v753, 0.0
        %v776 = vmax.f32 %v758, 0.0
        %v777 = vmax.f32 %v761, 0.0
        %v778 = vmax.f32 %v766, 0.0
        %v779 = vmax.f32 %v769, 0.0
        %v780 = vpack.c.bf16 %v773, %v772
        %v781 = vpack.c.bf16 %v775, %v774
        %v782 = vpack.c.bf16 %v777, %v776
        %v783 = vpack.c.bf16 %v779, %v778
        %s784 = scalar_lea.vmem [#allocation2], 256
        %v785 = vld [vmem:[%s784] sm:$0xf]
        %v786 = vld [vmem:[%s784 + $0x4] sm:$0xf]
        %v787 = vld [vmem:[%s784 + $0x8] sm:$0xf]
        %v788 = vld [vmem:[%s784 + $0xc] sm:$0xf]
        %v789 = vld [vmem:[%s784 + $0x10] sm:$0xf]
        %v790 = vld [vmem:[%s784 + $0x14] sm:$0xf]
        %v791 = vld [vmem:[%s784 + $0x18] sm:$0xf]
        %v792 = vld [vmem:[%s784 + $0x1c] sm:$0xf]
        %v793 = vld [vmem:[%s784 + $0x20] sm:$0xf]
        %v794 = vld [vmem:[%s784 + $0x24] sm:$0xf]
        %v795 = vld [vmem:[%s784 + $0x28] sm:$0xf]
        %v796 = vld [vmem:[%s784 + $0x2c] sm:$0xf]
        %v797 = vld [vmem:[%s784 + $0x30] sm:$0xf]
        %v798 = vld [vmem:[%s784 + $0x34] sm:$0xf]
        %v799 = vld [vmem:[%s784 + $0x38] sm:$0xf]
        %v800 = vld [vmem:[%s784 + $0x3c] sm:$0xf]
        %v801 = vld [vmem:[%s2 + $0x4] sm:$0x1]
        %v802 = vlaneseq
        %v803 = vshrl.u32 %v802, 7
        %v804 = vsub.s32 0, %v803
        %v805 = vrot.slane %v801, %v804
        %v822 = vunpack.c.l.b16 %v785
        %v823 = vunpack.c.l.b16 %v786
        %v824 = vunpack.c.l.b16 %v787
        %v825 = vunpack.c.l.b16 %v788
        %v826 = vunpack.c.l.b16 %v789
        %v827 = vunpack.c.l.b16 %v790
        %v828 = vunpack.c.l.b16 %v791
        %v829 = vunpack.c.l.b16 %v792
        %v830 = vunpack.c.l.b16 %v793
        %v831 = vunpack.c.l.b16 %v794
        %v832 = vunpack.c.l.b16 %v795
        %v833 = vunpack.c.l.b16 %v796
        %v834 = vunpack.c.l.b16 %v797
        %v835 = vunpack.c.l.b16 %v798
        %v836 = vunpack.c.l.b16 %v799
        %v837 = vunpack.c.l.b16 %v800
        %v838 = vpack.c.b16 %v823, %v822
        %v839 = vpack.c.b16 %v825, %v824
        %v840 = vpack.c.b16 %v827, %v826
        %v841 = vpack.c.b16 %v829, %v828
        %v842 = vpack.c.b16 %v831, %v830
        %v843 = vpack.c.b16 %v833, %v832
        %v844 = vpack.c.b16 %v835, %v834
        %v845 = vpack.c.b16 %v837, %v836
        %854 = vmatprep.subr.bf16.mxu0 0
        %855 = vmatpush1.bf16.msra.mxu0 %v838
        %856 = vmatprep.subr.bf16.mxu0 0
        %857 = vmatpush1.bf16.msra.mxu0 %v839
        %858 = vmatprep.subr.bf16.mxu0 0
        %859 = vmatpush1.bf16.msra.mxu0 %v840
        %860 = vmatprep.subr.bf16.mxu0 0
        %861 = vmatpush1.bf16.msra.mxu0 %v841
        %862 = vmatprep.subr.bf16.mxu0 0
        %863 = vmatpush1.bf16.msra.mxu0 %v842
        %864 = vmatprep.subr.bf16.mxu0 0
        %865 = vmatpush1.bf16.msra.mxu0 %v843
        %866 = vmatprep.subr.bf16.mxu0 0
        %867 = vmatpush1.bf16.msra.mxu0 %v844
        %868 = vmatprep.subr.bf16.mxu0 0
        %869 = vmatpush1.bf16.msra.mxu0 %v845
        %870 = vmatprep.subr.bf16.mxu0 0
        %871 = vmatpush1.bf16.msra.mxu0 0
        %872 = vmatprep.subr.bf16.mxu0 0
        %873 = vmatpush1.bf16.msra.mxu0 0
        %874 = vmatprep.subr.bf16.mxu0 0
        %875 = vmatpush1.bf16.msra.mxu0 0
        %876 = vmatprep.subr.bf16.mxu0 0
        %877 = vmatpush1.bf16.msra.mxu0 0
        %878 = vmatprep.subr.bf16.mxu0 0
        %879 = vmatpush1.bf16.msra.mxu0 0
        %880 = vmatprep.subr.bf16.mxu0 0
        %881 = vmatpush1.bf16.msra.mxu0 0
        %882 = vmatprep.subr.bf16.mxu0 0
        %883 = vmatpush1.bf16.msra.mxu0 0
        %884 = vmatprep.subr.bf16.mxu0 0
        %885 = vmatpush1.bf16.msra.mxu0 0
        %886 = vmatprep.mubr.bf16.mxu0 0
        %887 = vmatmul.mubr.bf16.gmra.mrb[0].mxu0 %v780
        %v888 = vpop.f32.mrb[0].mxu0
        %v889 = vadd.f32 %v805, %v888
        %v890 = vpop.f32.mrb[0].mxu0
        %v891 = vpop.f32.mrb[0].mxu0
        %v892 = vadd.f32 %v805, %v891
        %v893 = vpop.f32.mrb[0].mxu0
        %894 = vmatprep.mubr.bf16.mxu0 0
        %895 = vmatmul.mubr.bf16.gmra.mrb[0].mxu0 %v781
        %v896 = vpop.f32.mrb[0].mxu0
        %v897 = vadd.f32 %v805, %v896
        %v898 = vpop.f32.mrb[0].mxu0
        %v899 = vpop.f32.mrb[0].mxu0
        %v900 = vadd.f32 %v805, %v899
        %v901 = vpop.f32.mrb[0].mxu0
        %902 = vmatprep.mubr.bf16.mxu0 0
        %903 = vmatmul.mubr.bf16.gmra.mrb[0].mxu0 %v782
        %v904 = vpop.f32.mrb[0].mxu0
        %v905 = vadd.f32 %v805, %v904
        %v906 = vpop.f32.mrb[0].mxu0
        %v907 = vpop.f32.mrb[0].mxu0
        %v908 = vadd.f32 %v805, %v907
        %v909 = vpop.f32.mrb[0].mxu0
        %910 = vmatprep.mubr.bf16.mxu0 0
        %911 = vmatmul.mubr.bf16.gmra.mrb[0].mxu0 %v783
        %v912 = vpop.f32.mrb[0].mxu0
        %v913 = vadd.f32 %v805, %v912
        %v914 = vpop.f32.mrb[0].mxu0
        %v915 = vpop.f32.mrb[0].mxu0
        %v916 = vadd.f32 %v805, %v915
        %v917 = vpop.f32.mrb[0].mxu0
        %918 = vdwg.mxu0
        %v919 = vmax.f32 %v889, 0.0
        %v920 = vmax.f32 %v892, 0.0
        %v921 = vmax.f32 %v897, 0.0
        %v922 = vmax.f32 %v900, 0.0
        %v923 = vmax.f32 %v905, 0.0
        %v924 = vmax.f32 %v908, 0.0
        %v925 = vmax.f32 %v913, 0.0
        %v926 = vmax.f32 %v916, 0.0
        %v927 = vpack.c.bf16 %v920, %v919
        %v928 = vpack.c.bf16 %v922, %v921
        %v929 = vpack.c.bf16 %v924, %v923
        %v930 = vpack.c.bf16 %v926, %v925
        %v935 = vunpack.c.l.b16 %v927
        %v936 = vunpack.c.h.b16 %v927
        %v937 = vunpack.c.l.b16 %v928
        %v938 = vunpack.c.h.b16 %v928
        %v939 = vunpack.c.l.b16 %v929
        %v940 = vunpack.c.h.b16 %v929
        %v941 = vunpack.c.l.b16 %v930
        %v942 = vunpack.c.h.b16 %v930
        %v943 = vpack.c.b16 %v935, %v935
        %v944 = vpack.c.b16 %v936, %v936
        %v945 = vpack.c.b16 %v937, %v937
        %v946 = vpack.c.b16 %v938, %v938
        %v947 = vpack.c.b16 %v939, %v939
        %v948 = vpack.c.b16 %v940, %v940
        %v949 = vpack.c.b16 %v941, %v941
        %v950 = vpack.c.b16 %v942, %v942
        %959 = vst [vmem:[%s179] sm:$0xf] %v943
        %960 = vst [vmem:[%s179 + $0x4] sm:$0xf] %v944
        %961 = vst [vmem:[%s179 + $0x8] sm:$0xf] %v945
        %962 = vst [vmem:[%s179 + $0xc] sm:$0xf] %v946
        %963 = vst [vmem:[%s179 + $0x10] sm:$0xf] %v947
        %964 = vst [vmem:[%s179 + $0x14] sm:$0xf] %v948
        %965 = vst [vmem:[%s179 + $0x18] sm:$0xf] %v949
        %966 = vst [vmem:[%s179 + $0x1c] sm:$0xf] %v950
        %s967 = sand.u32 %s94, 1
        %s968 = scalar_lea.sflag [#allocation4], %s967
        %s969 = sand.u32 %s94, 1
        %s970 = smul.addr %s969, 32
        %s971 = scalar_lea.vmem [#allocation5], %s970
        // Predicated region
        $region37: #{tpu_custom_call.1} parent=31 // pred_check
          %p972 = pneg %p104
        $region38: #{tpu_custom_call.1} parent=31 // pred_check_branch
          %974 = sbr.rel (%p972) target = $region40
        $region39: #{tpu_custom_call.1} parent=31 // pred_region
          %s975 = smul.u32 8, %s18
          %s977 = ssub.s32 512, 512
          %978 = vsyncadd %s968, %s977
          %s979 = smul.addr %s975, 64
          %s980 = scalar_lea.hbm %s3, %s979
          %s981 = sshll.u32 %s971, 4
          %s982 = int_to_ptr.vmem [resolvable:$true] %s981
          %987 = dma.vmem_to_hbm [thread:$0]  %s982, 512, %s980, %s968, 64, 64, 4
        $region40: #{tpu_custom_call.1} parent=31 // pred_fallthru
          _
      $region32: #{tpu_custom_call.1} parent=5 // pred_fallthru
        _
      %p988 = scmp.le.s32.totalorder 2, %s13
      // Predicated region
      $region41: #{tpu_custom_call.1} parent=5 // pred_check
        %p989 = pneg %p988
      $region42: #{tpu_custom_call.1} parent=5 // pred_check_branch
        %991 = sbr.rel (%p989) target = $region44
      $region43: #{tpu_custom_call.1} parent=5 // pred_region
        %s992 = ssub.s32 %s13, 2
        // Predicated region
        $region45: #{tpu_custom_call.1} parent=43 // pred_check
          %p993 = pneg %p110
        $region46: #{tpu_custom_call.1} parent=43 // pred_check_branch
          %995 = sbr.rel (%p993) target = $region48
        $region47: #{tpu_custom_call.1} parent=43 // pred_region
          %s996 = sand.u32 %s95, 1
          %s997 = scalar_lea.sflag [#allocation4], %s996
          %s998 = sand.u32 %s95, 1
          %s999 = smul.addr %s998, 32
          %s1000 = scalar_lea.vmem [#allocation5], %s999
          %1001 = dma.done %s997, 512
        $region48: #{tpu_custom_call.1} parent=43 // pred_fallthru
          _
      $region44: #{tpu_custom_call.1} parent=5 // pred_fallthru
        _
    $region6: #{tpu_custom_call.1} parent=1 // loop_footer
      %s17 = sadd.s32 1, %s13
    $region7: #{tpu_custom_call.1} parent=1 // loop_footer_branch
      %12 = sbr.rel target = $region3
    $region8: #{tpu_custom_call.1} parent=1 // loop_exit
      _
    %1002 = vsyncpa [#allocation3], 1
    %s1003 = scalar_lea.sflag [#allocation3], 1
    %1004 = vsyncpa %s1003, 1
    %1005 = vsyncpa [#allocation4], 1
    %s1006 = scalar_lea.sflag [#allocation4], 1
    %1007 = vsyncpa %s1006, 1

</llo_original>
